<compile_context>
chip_gen: v7x
topology: tpu7x:2x2x1
jax: 0.10.0
libtpu: 0.0.40
codegen_flags: <defaults>
</compile_context>

<pallas_src>
import jax
import jax.numpy as jnp
from jax.experimental import pallas as pl
from jax.experimental.pallas import tpu as pltpu


def _disc_kernel(x_ref, mean_ref, w1a_ref, w1b_ref, b1_ref,
                 w2_ref, b2_ref, w3_ref, b3_ref, out_ref):
    # MXU inputs in bf16 (native fast path), accumulation in f32; elementwise in f32.
    x_bf = x_ref[...].astype(jnp.bfloat16)                    # (TB, D)
    mean_bf = mean_ref[...].astype(jnp.bfloat16)               # (1, D)  global batch mean

    # Layer 1: cat([x, mean], 1) @ W1 + b1  ==  x @ W1a + (mean @ W1b + b1)
    # The mean half is a (1,D)@(D,256) matmul folded into an effective bias that
    # broadcasts over the batch tile via the VPU add (no broadcast_to materialized).
    bias_eff = jnp.dot(mean_bf, w1b_ref[...],
                       preferred_element_type=jnp.float32) + b1_ref[...]      # (1, 256)
    h1 = jnp.dot(x_bf, w1a_ref[...], preferred_element_type=jnp.float32)      # (TB, 256)
    h1 = jnp.maximum(h1 + bias_eff, 0.0)                                       # ReLU, f32

    # Layer 2: Linear(256, 128) + ReLU.
    h2 = jnp.dot(h1.astype(jnp.bfloat16), w2_ref[...],
                 preferred_element_type=jnp.float32) + b2_ref[...]            # (TB, 128)
    h2 = jnp.maximum(h2, 0.0)

    # Layer 3: Linear(128, 1) as VPU multiply + XLU lane reduction (MXU stays idle).
    w3_row = w3_ref[...].astype(jnp.float32)                                   # (1, 128)
    h3 = jnp.sum(h2 * w3_row, axis=-1, keepdims=True) + b3_ref[...]            # (TB, 1)

    out_ref[...] = jax.nn.sigmoid(h3).astype(out_ref.dtype)


def discriminator_forward(x, params, *, tb=1024):
    """x: (B, D) float32. params: dict from init_params (bf16 weights, f32 biases)."""
    B, D = x.shape
    TB = min(tb, B)                       # batch tile; sized for v7x's 64 MiB VMEM
    grid = (pl.cdiv(B, TB),)

    # Global batch mean hoisted out of the tiled kernel (must NOT be per-tile).
    mean = jnp.mean(x, axis=0, keepdims=True)                 # (1, D) f32

    w1a, w1b, b1 = params["w1a"], params["w1b"], params["b1"]
    w2, b2 = params["w2"], params["b2"]
    w3, b3 = params["w3"], params["b3"]

    def const_spec(arr):
        shape = arr.shape
        return pl.BlockSpec(shape, lambda i: (0,) * len(shape))

    # TODO(synk): for very large B make the (B,1) output lane-dense (pack along lanes)
    # to avoid masked vst.msk stores; irrelevant at the small batch used here.
    return pl.pallas_call(
        _disc_kernel,
        out_shape=jax.ShapeDtypeStruct((B, 1), jnp.float32),
        grid=grid,
        in_specs=[
            pl.BlockSpec((TB, D), lambda i: (i, 0)),           # x: tiled over batch
            const_spec(mean),                                  # (1, D) global mean
            const_spec(w1a), const_spec(w1b), const_spec(b1),  # weights VMEM-resident
            const_spec(w2), const_spec(b2),
            const_spec(w3), const_spec(b3),
        ],
        out_specs=pl.BlockSpec((TB, 1), lambda i: (i, 0)),
        compiler_params=pltpu.CompilerParams(
            dimension_semantics=("parallel",)),                # 2x on v7x megacore
    )(x, mean, w1a, w1b, b1, w2, b2, w3, b3)


def init_params(key, input_dim):
    """nn.Linear-style init (U[-1/sqrt(fan_in), +1/sqrt(fan_in)]); weights -> bf16."""
    def linear(k, fan_in, fan_out):
        kw, kb = jax.random.split(k)
        bound = fan_in ** -0.5
        w = jax.random.uniform(kw, (fan_in, fan_out), jnp.float32, -bound, bound)
        b = jax.random.uniform(kb, (1, fan_out), jnp.float32, -bound, bound)
        return w, b

    k1, k2, k3 = jax.random.split(key, 3)
    w1, b1 = linear(k1, 2 * input_dim, 256)
    w2, b2 = linear(k2, 256, 128)
    w3, b3 = linear(k3, 128, 1)
    return {
        "w1a": w1[:input_dim].astype(jnp.bfloat16),   # half of W1 applied to x
        "w1b": w1[input_dim:].astype(jnp.bfloat16),   # half of W1 applied to batch mean
        "b1": b1,                                     # (1, 256) f32
        "w2": w2.astype(jnp.bfloat16), "b2": b2,      # (256,128) bf16, (1,128) f32
        "w3": w3.T.astype(jnp.bfloat16),              # stored as (1, 128) row, bf16
        "b3": b3,                                     # (1, 1) f32
    }


def _reference(x, params):
    """Pure-JAX reference (concat formulation, same bf16 weights / f32 accumulate)."""
    mean_b = jnp.broadcast_to(jnp.mean(x, axis=0, keepdims=True), x.shape)
    feat = jnp.concatenate([x, mean_b], axis=1).astype(jnp.bfloat16)
    w1 = jnp.concatenate([params["w1a"], params["w1b"]], axis=0)
    h1 = jax.nn.relu(jnp.dot(feat, w1, preferred_element_type=jnp.float32)
                     + params["b1"])
    h2 = jax.nn.relu(jnp.dot(h1.astype(jnp.bfloat16), params["w2"],
                             preferred_element_type=jnp.float32) + params["b2"])
    h3 = jnp.sum(h2 * params["w3"].astype(jnp.float32), axis=-1, keepdims=True)
    return jax.nn.sigmoid(h3 + params["b3"])


if __name__ == "__main__":
    key = jax.random.PRNGKey(0)
    k_param, k_x = jax.random.split(key)

    B, D = 8, 32                         # small batch, input_dim = 32
    params = init_params(k_param, D)
    x = jax.random.normal(k_x, (B, D), dtype=jnp.float32)

    out = jax.block_until_ready(discriminator_forward(x, params))
    ref = _reference(x, params)

    assert out.shape == (B, 1)
    assert out.dtype == jnp.float32
    assert jnp.allclose(out, ref, atol=1e-4, rtol=1e-4)

    print("KERNEL_OK")
</pallas_src>

<mosaic_0001>
module attributes {stable_mosaic.version = 11 : i64} {
  func.func @_disc_kernel(%arg0: i32, %arg1: memref<8x32xf32, #tpu.memory_space<vmem>>, %arg2: memref<1x32xf32, #tpu.memory_space<vmem>>, %arg3: memref<32x256xbf16, #tpu.memory_space<vmem>>, %arg4: memref<32x256xbf16, #tpu.memory_space<vmem>>, %arg5: memref<1x256xf32, #tpu.memory_space<vmem>>, %arg6: memref<256x128xbf16, #tpu.memory_space<vmem>>, %arg7: memref<1x128xf32, #tpu.memory_space<vmem>>, %arg8: memref<1x128xbf16, #tpu.memory_space<vmem>>, %arg9: memref<1x1xf32, #tpu.memory_space<vmem>>, %arg10: memref<8x1xf32, #tpu.memory_space<vmem>>) attributes {dimension_semantics = [#tpu.dimension_semantics<parallel>], iteration_bounds = array<i64: 1>, scalar_prefetch = 0 : i64, scratch_operands = 0 : i64, tpu.core_type = #tpu.core_type<tc>, window_params = [{transform_indices = @transform_0, window_bounds = array<i64: 8, 32>}, {pipeline_mode = #tpu.pipeline_mode<synchronous>, transform_indices = @transform_1, window_bounds = array<i64: 1, 32>}, {pipeline_mode = #tpu.pipeline_mode<synchronous>, transform_indices = @transform_2, window_bounds = array<i64: 32, 256>}, {pipeline_mode = #tpu.pipeline_mode<synchronous>, transform_indices = @transform_3, window_bounds = array<i64: 32, 256>}, {pipeline_mode = #tpu.pipeline_mode<synchronous>, transform_indices = @transform_4, window_bounds = array<i64: 1, 256>}, {pipeline_mode = #tpu.pipeline_mode<synchronous>, transform_indices = @transform_5, window_bounds = array<i64: 256, 128>}, {pipeline_mode = #tpu.pipeline_mode<synchronous>, transform_indices = @transform_6, window_bounds = array<i64: 1, 128>}, {pipeline_mode = #tpu.pipeline_mode<synchronous>, transform_indices = @transform_7, window_bounds = array<i64: 1, 128>}, {pipeline_mode = #tpu.pipeline_mode<synchronous>, transform_indices = @transform_8, window_bounds = array<i64: 1, 1>}, {transform_indices = @transform_9, window_bounds = array<i64: 8, 1>}]} {
    %c0 = arith.constant 0 : index
    %c0_0 = arith.constant 0 : index
    %0 = vector.load %arg1[%c0, %c0_0] : memref<8x32xf32, #tpu.memory_space<vmem>>, vector<8x32xf32>
    %1 = arith.truncf %0 : vector<8x32xf32> to vector<8x32xbf16>
    %c0_1 = arith.constant 0 : index
    %c0_2 = arith.constant 0 : index
    %2 = vector.load %arg2[%c0_1, %c0_2] : memref<1x32xf32, #tpu.memory_space<vmem>>, vector<1x32xf32>
    %3 = arith.truncf %2 : vector<1x32xf32> to vector<1x32xbf16>
    %c0_3 = arith.constant 0 : index
    %c0_4 = arith.constant 0 : index
    %4 = vector.load %arg4[%c0_3, %c0_4] : memref<32x256xbf16, #tpu.memory_space<vmem>>, vector<32x256xbf16>
    %cst = arith.constant dense<0.000000e+00> : vector<1x256xf32>
    %5 = tpu.matmul %3, %4, %cst {dimension_numbers = #tpu.dot_dimension_numbers<[1], [0], [0], [1], [0, 0, 1, 1], [], []>} : vector<1x32xbf16>, vector<32x256xbf16>, vector<1x256xf32> -> vector<1x256xf32>
    %c0_5 = arith.constant 0 : index
    %c0_6 = arith.constant 0 : index
    %6 = vector.load %arg5[%c0_5, %c0_6] : memref<1x256xf32, #tpu.memory_space<vmem>>, vector<1x256xf32>
    %7 = arith.addf %5, %6 : vector<1x256xf32>
    %c0_7 = arith.constant 0 : index
    %c0_8 = arith.constant 0 : index
    %8 = vector.load %arg3[%c0_7, %c0_8] : memref<32x256xbf16, #tpu.memory_space<vmem>>, vector<32x256xbf16>
    %cst_9 = arith.constant dense<0.000000e+00> : vector<8x256xf32>
    %9 = tpu.matmul %1, %8, %cst_9 {dimension_numbers = #tpu.dot_dimension_numbers<[1], [0], [0], [1], [0, 0, 1, 1], [], []>} : vector<8x32xbf16>, vector<32x256xbf16>, vector<8x256xf32> -> vector<8x256xf32>
    %10 = vector.broadcast %7 : vector<1x256xf32> to vector<8x256xf32>
    %11 = arith.addf %9, %10 : vector<8x256xf32>
    %cst_10 = arith.constant 0.000000e+00 : f32
    %12 = vector.broadcast %cst_10 : f32 to vector<8x256xf32>
    %13 = arith.maximumf %11, %12 : vector<8x256xf32>
    %14 = arith.truncf %13 : vector<8x256xf32> to vector<8x256xbf16>
    %c0_11 = arith.constant 0 : index
    %c0_12 = arith.constant 0 : index
    %15 = vector.load %arg6[%c0_11, %c0_12] : memref<256x128xbf16, #tpu.memory_space<vmem>>, vector<256x128xbf16>
    %cst_13 = arith.constant dense<0.000000e+00> : vector<8x128xf32>
    %16 = tpu.matmul %14, %15, %cst_13 {dimension_numbers = #tpu.dot_dimension_numbers<[1], [0], [0], [1], [0, 0, 1, 1], [], []>} : vector<8x256xbf16>, vector<256x128xbf16>, vector<8x128xf32> -> vector<8x128xf32>
    %c0_14 = arith.constant 0 : index
    %c0_15 = arith.constant 0 : index
    %17 = vector.load %arg7[%c0_14, %c0_15] : memref<1x128xf32, #tpu.memory_space<vmem>>, vector<1x128xf32>
    %18 = vector.broadcast %17 : vector<1x128xf32> to vector<8x128xf32>
    %19 = arith.addf %16, %18 : vector<8x128xf32>
    %cst_16 = arith.constant 0.000000e+00 : f32
    %20 = vector.broadcast %cst_16 : f32 to vector<8x128xf32>
    %21 = arith.maximumf %19, %20 : vector<8x128xf32>
    %c0_17 = arith.constant 0 : index
    %c0_18 = arith.constant 0 : index
    %22 = vector.load %arg8[%c0_17, %c0_18] : memref<1x128xbf16, #tpu.memory_space<vmem>>, vector<1x128xbf16>
    %23 = arith.extf %22 : vector<1x128xbf16> to vector<1x128xf32>
    %24 = vector.broadcast %23 : vector<1x128xf32> to vector<8x128xf32>
    %25 = arith.mulf %21, %24 : vector<8x128xf32>
    %cst_19 = arith.constant dense<0.000000e+00> : vector<8xf32>
    %26 = vector.multi_reduction <add>, %25, %cst_19 [1] : vector<8x128xf32> to vector<8xf32>
    %27 = vector.shape_cast %26 : vector<8xf32> to vector<8x1xf32>
    %c0_20 = arith.constant 0 : index
    %c0_21 = arith.constant 0 : index
    %28 = vector.load %arg9[%c0_20, %c0_21] : memref<1x1xf32, #tpu.memory_space<vmem>>, vector<1x1xf32>
    %29 = vector.broadcast %28 : vector<1x1xf32> to vector<8x1xf32>
    %30 = arith.addf %27, %29 : vector<8x1xf32>
    %31 = arith.negf %30 : vector<8x1xf32>
    %32 = math.exp %31 : vector<8x1xf32>
    %cst_22 = arith.constant 1.000000e+00 : f32
    %33 = vector.broadcast %cst_22 : f32 to vector<8x1xf32>
    %34 = arith.addf %33, %32 : vector<8x1xf32>
    %35 = arith.divf %33, %34 : vector<8x1xf32>
    %c0_23 = arith.constant 0 : index
    %c0_24 = arith.constant 0 : index
    %36 = vector.load %arg10[%c0_23, %c0_24] : memref<8x1xf32, #tpu.memory_space<vmem>>, vector<8x1xf32>
    tpu.vector_store %arg10[%c0_23, %c0_24], %35 {strides = array<i32>} : memref<8x1xf32, #tpu.memory_space<vmem>>, vector<8x1xf32>,
    return
  }
  func.func @transform_0(%arg0: i32) -> (i32, i32) {
    %c0_i32 = arith.constant 0 : i32
    %c0_i32_0 = arith.constant 0 : i32
    return %arg0, %c0_i32 : i32, i32
  }
  func.func @transform_1(%arg0: i32) -> (i32, i32) {
    %c0_i32 = arith.constant 0 : i32
    %c0_i32_0 = arith.constant 0 : i32
    %c0_i32_1 = arith.constant 0 : i32
    return %c0_i32, %c0_i32_0 : i32, i32
  }
  func.func @transform_2(%arg0: i32) -> (i32, i32) {
    %c0_i32 = arith.constant 0 : i32
    %c0_i32_0 = arith.constant 0 : i32
    %c0_i32_1 = arith.constant 0 : i32
    return %c0_i32, %c0_i32_0 : i32, i32
  }
  func.func @transform_3(%arg0: i32) -> (i32, i32) {
    %c0_i32 = arith.constant 0 : i32
    %c0_i32_0 = arith.constant 0 : i32
    %c0_i32_1 = arith.constant 0 : i32
    return %c0_i32, %c0_i32_0 : i32, i32
  }
  func.func @transform_4(%arg0: i32) -> (i32, i32) {
    %c0_i32 = arith.constant 0 : i32
    %c0_i32_0 = arith.constant 0 : i32
    %c0_i32_1 = arith.constant 0 : i32
    return %c0_i32, %c0_i32_0 : i32, i32
  }
  func.func @transform_5(%arg0: i32) -> (i32, i32) {
    %c0_i32 = arith.constant 0 : i32
    %c0_i32_0 = arith.constant 0 : i32
    %c0_i32_1 = arith.constant 0 : i32
    return %c0_i32, %c0_i32_0 : i32, i32
  }
  func.func @transform_6(%arg0: i32) -> (i32, i32) {
    %c0_i32 = arith.constant 0 : i32
    %c0_i32_0 = arith.constant 0 : i32
    %c0_i32_1 = arith.constant 0 : i32
    return %c0_i32, %c0_i32_0 : i32, i32
  }
  func.func @transform_7(%arg0: i32) -> (i32, i32) {
    %c0_i32 = arith.constant 0 : i32
    %c0_i32_0 = arith.constant 0 : i32
    %c0_i32_1 = arith.constant 0 : i32
    return %c0_i32, %c0_i32_0 : i32, i32
  }
  func.func @transform_8(%arg0: i32) -> (i32, i32) {
    %c0_i32 = arith.constant 0 : i32
    %c0_i32_0 = arith.constant 0 : i32
    %c0_i32_1 = arith.constant 0 : i32
    return %c0_i32, %c0_i32_0 : i32, i32
  }
  func.func @transform_9(%arg0: i32) -> (i32, i32) {
    %c0_i32 = arith.constant 0 : i32
    %c0_i32_0 = arith.constant 0 : i32
    return %arg0, %c0_i32 : i32, i32
  }
}

</mosaic_0001>

<llo_original>
// kernel: tpu_custom_call.1
$region0: #{tpu_custom_call.1}
  #allocation0 [shape = 'u32[]', space=smem, size = 0x4, offset = 0x4, fixed_abs, tag = 'smem constant byte address 0x4 - core index']
  #allocation1 [shape = 'u32[144,128]{1,0:T(1,128)}', space=vmem, size = 0x12000, scoped, tag = 'internal scratch']
  #allocation2 [shape = 'f32[1,1]{1,0:T(1,128)S(1)}', space=vmem, size = 0x200, scoped, tag = 'scoped memory for tpu_custom_call.1']
  %s0 = inlined_call_operand.hbm [shape: f32[8,32], index: 0, kind: input, shape index: {}]
  %s1 = inlined_call_operand.vmem [shape: f32[1,32], index: 1, kind: input, shape index: {}]
  %s2 = inlined_call_operand.hbm [shape: bf16[32,256], index: 2, kind: input, shape index: {}]
  %s3 = inlined_call_operand.hbm [shape: bf16[32,256], index: 3, kind: input, shape index: {}]
  %s4 = inlined_call_operand.vmem [shape: f32[1,256], index: 4, kind: input, shape index: {}]
  %s5 = inlined_call_operand.hbm [shape: bf16[256,128], index: 5, kind: input, shape index: {}]
  %s6 = inlined_call_operand.vmem [shape: f32[1,128], index: 6, kind: input, shape index: {}]
  %s7 = inlined_call_operand.vmem [shape: bf16[1,128], index: 7, kind: input, shape index: {}]
  %s8 = inlined_call_operand.<no memory space> [shape: f32[1,1], index: 8, kind: input, shape index: {}]
  %s9 = inlined_call_operand.vmem [shape: f32[8,1], index: 9, kind: output, shape index: {}]
  %s10 = sld [smem:[#allocation0]]
  $region62: #{tpu_custom_call.1} parent=0
    _
  %s12 = ssub.s32 1, %s10
  %s13 = scalar_select 0, %s12, %s10
  %v14 = vstv %s8
  %15 = vst [vmem:[#allocation2] sm:$0x1] %v14
  $region1: #{tpu_custom_call.1} parent=0
    #allocation3 [shape = 'u8[4096]{0}', space=vmem, size = 0x1000, scoped, tag = 'input window, operand 0, single buffered']
    #allocation4 [shape = 's32[1]{0}', space=sflag, size = 0x4, scoped, tag = 'scoped memory for tpu_custom_call.1']
    #allocation5 [shape = 'u8[16384]{0}', space=vmem, size = 0x4000, scoped, tag = 'input window, operand 2, single buffered']
    #allocation6 [shape = 's32[1]{0}', space=sflag, size = 0x4, scoped, tag = 'scoped memory for tpu_custom_call.1']
    #allocation7 [shape = 'u8[16384]{0}', space=vmem, size = 0x4000, scoped, tag = 'input window, operand 3, single buffered']
    #allocation8 [shape = 'u8[65536]{0}', space=vmem, size = 0x10000, scoped, tag = 'input window, operand 5, single buffered']
    #allocation9 [shape = 's32[1]{0}', space=sflag, size = 0x4, scoped, tag = 'scoped memory for tpu_custom_call.1']
    %16 = vsyncpa [#allocation4], 0
    %17 = vsyncpa [#allocation6], 0
    %18 = vsyncpa [#allocation9], 0
    // Predicated region
    $region2: #{tpu_custom_call.1} parent=1 // pred_check
      _
    $region3: #{tpu_custom_call.1} parent=1 // pred_check_branch
      %20 = sbr.rel (0) target = $region5
    $region4: #{tpu_custom_call.1} parent=1 // pred_region
      %s22 = ssub.s32 128, 128
      %23 = vsyncadd [#allocation4], %s22
      %s25 = sshll.u32 [#allocation3], 4
      %s26 = int_to_ptr.vmem [resolvable:$true] %s25
      %28 = dma.hbm_to_vmem [thread:$0]  %s0, 128, %s26, [#allocation4]
    $region5: #{tpu_custom_call.1} parent=1 // pred_fallthru
      _
    // Predicated region
    $region6: #{tpu_custom_call.1} parent=1 // pred_check
      _
    $region7: #{tpu_custom_call.1} parent=1 // pred_check_branch
      %30 = sbr.rel (0) target = $region9
    $region8: #{tpu_custom_call.1} parent=1 // pred_region
      _
    $region9: #{tpu_custom_call.1} parent=1 // pred_fallthru
      _
    // Predicated region
    $region10: #{tpu_custom_call.1} parent=1 // pred_check
      _
    $region11: #{tpu_custom_call.1} parent=1 // pred_check_branch
      %32 = sbr.rel (0) target = $region13
    $region12: #{tpu_custom_call.1} parent=1 // pred_region
      %s34 = ssub.s32 512, 512
      %35 = vsyncadd [#allocation6], %s34
      %s36 = sshll.u32 [#allocation5], 4
      %s37 = int_to_ptr.vmem [resolvable:$true] %s36
      %42 = dma.hbm_to_vmem [thread:$0]  %s2, 512, %s37, [#allocation6], 128, 128, 8
    $region13: #{tpu_custom_call.1} parent=1 // pred_fallthru
      _
    // Predicated region
    $region14: #{tpu_custom_call.1} parent=1 // pred_check
      _
    $region15: #{tpu_custom_call.1} parent=1 // pred_check_branch
      %44 = sbr.rel (0) target = $region17
    $region16: #{tpu_custom_call.1} parent=1 // pred_region
      %s46 = ssub.s32 512, 512
      %47 = vsyncadd [#allocation6], %s46
      %s48 = sshll.u32 [#allocation7], 4
      %s49 = int_to_ptr.vmem [resolvable:$true] %s48
      %54 = dma.hbm_to_vmem [thread:$0]  %s3, 512, %s49, [#allocation6], 128, 128, 8
    $region17: #{tpu_custom_call.1} parent=1 // pred_fallthru
      _
    // Predicated region
    $region18: #{tpu_custom_call.1} parent=1 // pred_check
      _
    $region19: #{tpu_custom_call.1} parent=1 // pred_check_branch
      %56 = sbr.rel (0) target = $region21
    $region20: #{tpu_custom_call.1} parent=1 // pred_region
      _
    $region21: #{tpu_custom_call.1} parent=1 // pred_fallthru
      _
    // Predicated region
    $region22: #{tpu_custom_call.1} parent=1 // pred_check
      _
    $region23: #{tpu_custom_call.1} parent=1 // pred_check_branch
      %58 = sbr.rel (0) target = $region25
    $region24: #{tpu_custom_call.1} parent=1 // pred_region
      %s60 = ssub.s32 2048, 2048
      %61 = vsyncadd [#allocation9], %s60
      %s62 = sshll.u32 [#allocation8], 4
      %s63 = int_to_ptr.vmem [resolvable:$true] %s62
      %68 = dma.hbm_to_vmem [thread:$0]  %s5, 2048, %s63, [#allocation9], 64, 64, 4
    $region25: #{tpu_custom_call.1} parent=1 // pred_fallthru
      _
    // Predicated region
    $region26: #{tpu_custom_call.1} parent=1 // pred_check
      _
    $region27: #{tpu_custom_call.1} parent=1 // pred_check_branch
      %70 = sbr.rel (0) target = $region29
    $region28: #{tpu_custom_call.1} parent=1 // pred_region
      _
    $region29: #{tpu_custom_call.1} parent=1 // pred_fallthru
      _
    // Predicated region
    $region30: #{tpu_custom_call.1} parent=1 // pred_check
      _
    $region31: #{tpu_custom_call.1} parent=1 // pred_check_branch
      %72 = sbr.rel (0) target = $region33
    $region32: #{tpu_custom_call.1} parent=1 // pred_region
      _
    $region33: #{tpu_custom_call.1} parent=1 // pred_fallthru
      _
    // Predicated region
    $region34: #{tpu_custom_call.1} parent=1 // pred_check
      _
    $region35: #{tpu_custom_call.1} parent=1 // pred_check_branch
      %74 = sbr.rel (0) target = $region37
    $region36: #{tpu_custom_call.1} parent=1 // pred_region
      _
    $region37: #{tpu_custom_call.1} parent=1 // pred_fallthru
      _
    // Predicated region
    $region38: #{tpu_custom_call.1} parent=1 // pred_check
      _
    $region39: #{tpu_custom_call.1} parent=1 // pred_check_branch
      %76 = sbr.rel (0) target = $region41
    $region40: #{tpu_custom_call.1} parent=1 // pred_region
      %77 = dma.done [#allocation4], 128
    $region41: #{tpu_custom_call.1} parent=1 // pred_fallthru
      _
    // Predicated region
    $region42: #{tpu_custom_call.1} parent=1 // pred_check
      _
    $region43: #{tpu_custom_call.1} parent=1 // pred_check_branch
      %79 = sbr.rel (0) target = $region45
    $region44: #{tpu_custom_call.1} parent=1 // pred_region
      %80 = dma.done [#allocation6], 512
    $region45: #{tpu_custom_call.1} parent=1 // pred_fallthru
      _
    // Predicated region
    $region46: #{tpu_custom_call.1} parent=1 // pred_check
      _
    $region47: #{tpu_custom_call.1} parent=1 // pred_check_branch
      %82 = sbr.rel (0) target = $region49
    $region48: #{tpu_custom_call.1} parent=1 // pred_region
      %83 = dma.done [#allocation6], 512
    $region49: #{tpu_custom_call.1} parent=1 // pred_fallthru
      _
    // Predicated region
    $region50: #{tpu_custom_call.1} parent=1 // pred_check
      _
    $region51: #{tpu_custom_call.1} parent=1 // pred_check_branch
      %85 = sbr.rel (0) target = $region53
    $region52: #{tpu_custom_call.1} parent=1 // pred_region
      %86 = dma.done [#allocation9], 2048
    $region53: #{tpu_custom_call.1} parent=1 // pred_fallthru
      _
    %v88 = vld [vmem:[#allocation3] sm:$0xff]
    %v89 = vpack.c.bf16 %v88, %v88
    %v90 = vld [vmem:[%s1] sm:$0x1]
    %v91 = vpack.c.bf16 %v90, %v90
    %v92 = vld [vmem:[#allocation7] sm:$0xff]
    %v93 = vld [vmem:[#allocation7 + $0x8] sm:$0xff]
    %v94 = vld [vmem:[#allocation7 + $0x10] sm:$0xff]
    %v95 = vld [vmem:[#allocation7 + $0x18] sm:$0xff]
    %v96 = vld [vmem:[%s4] sm:$0x3]
    %v101 = vunpack.c.l.b16 %v92
    %v102 = vunpack.c.h.b16 %v92
    %v103 = vunpack.c.l.b16 %v93
    %v104 = vunpack.c.h.b16 %v93
    %v105 = vunpack.c.l.b16 %v94
    %v106 = vunpack.c.h.b16 %v94
    %v107 = vunpack.c.l.b16 %v95
    %v108 = vunpack.c.h.b16 %v95
    %v109 = vpack.c.b16 %v103, %v101
    %v110 = vpack.c.b16 %v104, %v102
    %v111 = vpack.c.b16 %v107, %v105
    %v112 = vpack.c.b16 %v108, %v106
    %v118 = vlaneseq
    %v119 = vshrl.u32 %v118, 7
    %v120 = vsub.s32 0, %v119
    %v121 = vrot.slane %v96, %v120
    %v122 = vlaneseq
    %v123 = vshrl.u32 %v122, 7
    %v124 = vsub.s32 1, %v123
    %v125 = vrot.slane %v96, %v124
    %vm128 = vcmask 261120
    %v130 = vsel %vm128, %v91, 0
    %132 = vmatprep.subr.bf16.mxu0 %v110
    %133 = vmatpush1.bf16.msra.mxu0 %v109
    %134 = vmatprep.subr.bf16.mxu0 %v112
    %135 = vmatpush1.bf16.msra.mxu0 %v111
    %136 = vmatprep.subr.bf16.mxu0 0
    %137 = vmatpush1.bf16.msra.mxu0 0
    %138 = vmatprep.subr.bf16.mxu0 0
    %139 = vmatpush1.bf16.msra.mxu0 0
    %140 = vmatprep.subr.bf16.mxu0 0
    %141 = vmatpush1.bf16.msra.mxu0 0
    %142 = vmatprep.subr.bf16.mxu0 0
    %143 = vmatpush1.bf16.msra.mxu0 0
    %144 = vmatprep.subr.bf16.mxu0 0
    %145 = vmatpush1.bf16.msra.mxu0 0
    %146 = vmatprep.subr.bf16.mxu0 0
    %147 = vmatpush1.bf16.msra.mxu0 0
    %148 = vmatprep.subr.bf16.mxu0 0
    %149 = vmatpush1.bf16.msra.mxu0 0
    %150 = vmatprep.subr.bf16.mxu0 0
    %151 = vmatpush1.bf16.msra.mxu0 0
    %152 = vmatprep.subr.bf16.mxu0 0
    %153 = vmatpush1.bf16.msra.mxu0 0
    %154 = vmatprep.subr.bf16.mxu0 0
    %155 = vmatpush1.bf16.msra.mxu0 0
    %156 = vmatprep.subr.bf16.mxu0 0
    %157 = vmatpush1.bf16.msra.mxu0 0
    %158 = vmatprep.subr.bf16.mxu0 0
    %159 = vmatpush1.bf16.msra.mxu0 0
    %160 = vmatprep.subr.bf16.mxu0 0
    %161 = vmatpush1.bf16.msra.mxu0 0
    %162 = vmatprep.subr.bf16.mxu0 0
    %163 = vmatpush1.bf16.msra.mxu0 0
    %164 = vmatprep.mubr.bf16.mxu0 0
    %165 = vmatmul.mubr.bf16.gmra.mrb[0].mxu0 %v130
    %v166 = vpop.f32.mrb[0].mxu0
    %v167 = vadd.f32 %v121, %v166
    %v168 = vpop.f32.mrb[0].mxu0
    %v169 = vadd.f32 %v125, %v168
    %v170 = vpop.f32.mrb[0].mxu0
    %v171 = vpop.f32.mrb[0].mxu0
    %172 = vdwg.mxu0
    %v173 = vld [vmem:[#allocation5] sm:$0xff]
    %v174 = vld [vmem:[#allocation5 + $0x8] sm:$0xff]
    %v175 = vld [vmem:[#allocation5 + $0x10] sm:$0xff]
    %v176 = vld [vmem:[#allocation5 + $0x18] sm:$0xff]
    %v177 = vlaneseq
    %v178 = vshrl.u32 %v177, 7
    %v179 = vsub.s32 0, %v178
    %v180 = vrot.slane %v167, %v179
    %v181 = vlaneseq
    %v182 = vshrl.u32 %v181, 7
    %v183 = vsub.s32 0, %v182
    %v184 = vrot.slane %v169, %v183
    %v189 = vunpack.c.l.b16 %v173
    %v190 = vunpack.c.h.b16 %v173
    %v191 = vunpack.c.l.b16 %v174
    %v192 = vunpack.c.h.b16 %v174
    %v193 = vunpack.c.l.b16 %v175
    %v194 = vunpack.c.h.b16 %v175
    %v195 = vunpack.c.l.b16 %v176
    %v196 = vunpack.c.h.b16 %v176
    %v197 = vpack.c.b16 %v191, %v189
    %v198 = vpack.c.b16 %v192, %v190
    %v199 = vpack.c.b16 %v195, %v193
    %v200 = vpack.c.b16 %v196, %v194
    %v206 = vsel %vm128, %v89, 0
    %208 = vmatprep.subr.bf16.mxu0 %v198
    %209 = vmatpush1.bf16.msra.mxu0 %v197
    %210 = vmatprep.subr.bf16.mxu0 %v200
    %211 = vmatpush1.bf16.msra.mxu0 %v199
    %212 = vmatprep.subr.bf16.mxu0 0
    %213 = vmatpush1.bf16.msra.mxu0 0
    %214 = vmatprep.subr.bf16.mxu0 0
    %215 = vmatpush1.bf16.msra.mxu0 0
    %216 = vmatprep.subr.bf16.mxu0 0
    %217 = vmatpush1.bf16.msra.mxu0 0
    %218 = vmatprep.subr.bf16.mxu0 0
    %219 = vmatpush1.bf16.msra.mxu0 0
    %220 = vmatprep.subr.bf16.mxu0 0
    %221 = vmatpush1.bf16.msra.mxu0 0
    %222 = vmatprep.subr.bf16.mxu0 0
    %223 = vmatpush1.bf16.msra.mxu0 0
    %224 = vmatprep.subr.bf16.mxu0 0
    %225 = vmatpush1.bf16.msra.mxu0 0
    %226 = vmatprep.subr.bf16.mxu0 0
    %227 = vmatpush1.bf16.msra.mxu0 0
    %228 = vmatprep.subr.bf16.mxu0 0
    %229 = vmatpush1.bf16.msra.mxu0 0
    %230 = vmatprep.subr.bf16.mxu0 0
    %231 = vmatpush1.bf16.msra.mxu0 0
    %232 = vmatprep.subr.bf16.mxu0 0
    %233 = vmatpush1.bf16.msra.mxu0 0
    %234 = vmatprep.subr.bf16.mxu0 0
    %235 = vmatpush1.bf16.msra.mxu0 0
    %236 = vmatprep.subr.bf16.mxu0 0
    %237 = vmatpush1.bf16.msra.mxu0 0
    %238 = vmatprep.subr.bf16.mxu0 0
    %239 = vmatpush1.bf16.msra.mxu0 0
    %240 = vmatprep.mubr.bf16.mxu0 0
    %241 = vmatmul.mubr.bf16.gmra.mrb[0].mxu0 %v206
    %v242 = vpop.f32.mrb[0].mxu0
    %v243 = vadd.f32 %v180, %v242
    %v244 = vpop.f32.mrb[0].mxu0
    %v245 = vadd.f32 %v184, %v244
    %v246 = vpop.f32.mrb[0].mxu0
    %v247 = vpop.f32.mrb[0].mxu0
    %248 = vdwg.mxu0
    %v249 = vmax.f32 %v243, 0.0
    %v250 = vmax.f32 %v245, 0.0
    %v251 = vpack.c.bf16 %v249, %v249
    %v252 = vpack.c.bf16 %v250, %v250
    %v253 = vld [vmem:[#allocation8] sm:$0xf]
    %v254 = vld [vmem:[#allocation8 + $0x4] sm:$0xf]
    %v255 = vld [vmem:[#allocation8 + $0x8] sm:$0xf]
    %v256 = vld [vmem:[#allocation8 + $0xc] sm:$0xf]
    %v257 = vld [vmem:[#allocation8 + $0x10] sm:$0xf]
    %v258 = vld [vmem:[#allocation8 + $0x14] sm:$0xf]
    %v259 = vld [vmem:[#allocation8 + $0x18] sm:$0xf]
    %v260 = vld [vmem:[#allocation8 + $0x1c] sm:$0xf]
    %v261 = vld [vmem:[#allocation8 + $0x20] sm:$0xf]
    %v262 = vld [vmem:[#allocation8 + $0x24] sm:$0xf]
    %v263 = vld [vmem:[#allocation8 + $0x28] sm:$0xf]
    %v264 = vld [vmem:[#allocation8 + $0x2c] sm:$0xf]
    %v265 = vld [vmem:[#allocation8 + $0x30] sm:$0xf]
    %v266 = vld [vmem:[#allocation8 + $0x34] sm:$0xf]
    %v267 = vld [vmem:[#allocation8 + $0x38] sm:$0xf]
    %v268 = vld [vmem:[#allocation8 + $0x3c] sm:$0xf]
    %v269 = vld [vmem:[#allocation8 + $0x40] sm:$0xf]
    %v270 = vld [vmem:[#allocation8 + $0x44] sm:$0xf]
    %v271 = vld [vmem:[#allocation8 + $0x48] sm:$0xf]
    %v272 = vld [vmem:[#allocation8 + $0x4c] sm:$0xf]
    %v273 = vld [vmem:[#allocation8 + $0x50] sm:$0xf]
    %v274 = vld [vmem:[#allocation8 + $0x54] sm:$0xf]
    %v275 = vld [vmem:[#allocation8 + $0x58] sm:$0xf]
    %v276 = vld [vmem:[#allocation8 + $0x5c] sm:$0xf]
    %v277 = vld [vmem:[#allocation8 + $0x60] sm:$0xf]
    %v278 = vld [vmem:[#allocation8 + $0x64] sm:$0xf]
    %v279 = vld [vmem:[#allocation8 + $0x68] sm:$0xf]
    %v280 = vld [vmem:[#allocation8 + $0x6c] sm:$0xf]
    %v281 = vld [vmem:[#allocation8 + $0x70] sm:$0xf]
    %v282 = vld [vmem:[#allocation8 + $0x74] sm:$0xf]
    %v283 = vld [vmem:[#allocation8 + $0x78] sm:$0xf]
    %v284 = vld [vmem:[#allocation8 + $0x7c] sm:$0xf]
    %v285 = vld [vmem:[%s6] sm:$0x1]
    %v287 = vlaneseq
    %v288 = vshrl.u32 %v287, 7
    %v289 = vsub.s32 0, %v288
    %v290 = vrot.slane %v285, %v289
    %v324 = vunpack.c.l.b16 %v253
    %v325 = vunpack.c.l.b16 %v254
    %v326 = vunpack.c.l.b16 %v255
    %v327 = vunpack.c.l.b16 %v256
    %v328 = vunpack.c.l.b16 %v257
    %v329 = vunpack.c.l.b16 %v258
    %v330 = vunpack.c.l.b16 %v259
    %v331 = vunpack.c.l.b16 %v260
    %v332 = vunpack.c.l.b16 %v261
    %v333 = vunpack.c.l.b16 %v262
    %v334 = vunpack.c.l.b16 %v263
    %v335 = vunpack.c.l.b16 %v264
    %v336 = vunpack.c.l.b16 %v265
    %v337 = vunpack.c.l.b16 %v266
    %v338 = vunpack.c.l.b16 %v267
    %v339 = vunpack.c.l.b16 %v268
    %v340 = vunpack.c.l.b16 %v269
    %v341 = vunpack.c.l.b16 %v270
    %v342 = vunpack.c.l.b16 %v271
    %v343 = vunpack.c.l.b16 %v272
    %v344 = vunpack.c.l.b16 %v273
    %v345 = vunpack.c.l.b16 %v274
    %v346 = vunpack.c.l.b16 %v275
    %v347 = vunpack.c.l.b16 %v276
    %v348 = vunpack.c.l.b16 %v277
    %v349 = vunpack.c.l.b16 %v278
    %v350 = vunpack.c.l.b16 %v279
    %v351 = vunpack.c.l.b16 %v280
    %v352 = vunpack.c.l.b16 %v281
    %v353 = vunpack.c.l.b16 %v282
    %v354 = vunpack.c.l.b16 %v283
    %v355 = vunpack.c.l.b16 %v284
    %v356 = vpack.c.b16 %v325, %v324
    %v357 = vpack.c.b16 %v327, %v326
    %v358 = vpack.c.b16 %v329, %v328
    %v359 = vpack.c.b16 %v331, %v330
    %v360 = vpack.c.b16 %v333, %v332
    %v361 = vpack.c.b16 %v335, %v334
    %v362 = vpack.c.b16 %v337, %v336
    %v363 = vpack.c.b16 %v339, %v338
    %v364 = vpack.c.b16 %v341, %v340
    %v365 = vpack.c.b16 %v343, %v342
    %v366 = vpack.c.b16 %v345, %v344
    %v367 = vpack.c.b16 %v347, %v346
    %v368 = vpack.c.b16 %v349, %v348
    %v369 = vpack.c.b16 %v351, %v350
    %v370 = vpack.c.b16 %v353, %v352
    %v371 = vpack.c.b16 %v355, %v354
    %388 = vmatprep.subr.bf16.mxu0 0
    %389 = vmatpush1.bf16.msra.mxu0 %v356
    %390 = vmatprep.subr.bf16.mxu0 0
    %391 = vmatpush1.bf16.msra.mxu0 %v357
    %392 = vmatprep.subr.bf16.mxu0 0
    %393 = vmatpush1.bf16.msra.mxu0 %v358
    %394 = vmatprep.subr.bf16.mxu0 0
    %395 = vmatpush1.bf16.msra.mxu0 %v359
    %396 = vmatprep.subr.bf16.mxu0 0
    %397 = vmatpush1.bf16.msra.mxu0 %v360
    %398 = vmatprep.subr.bf16.mxu0 0
    %399 = vmatpush1.bf16.msra.mxu0 %v361
    %400 = vmatprep.subr.bf16.mxu0 0
    %401 = vmatpush1.bf16.msra.mxu0 %v362
    %402 = vmatprep.subr.bf16.mxu0 0
    %403 = vmatpush1.bf16.msra.mxu0 %v363
    %404 = vmatprep.subr.bf16.mxu0 0
    %405 = vmatpush1.bf16.msra.mxu0 %v364
    %406 = vmatprep.subr.bf16.mxu0 0
    %407 = vmatpush1.bf16.msra.mxu0 %v365
    %408 = vmatprep.subr.bf16.mxu0 0
    %409 = vmatpush1.bf16.msra.mxu0 %v366
    %410 = vmatprep.subr.bf16.mxu0 0
    %411 = vmatpush1.bf16.msra.mxu0 %v367
    %412 = vmatprep.subr.bf16.mxu0 0
    %413 = vmatpush1.bf16.msra.mxu0 %v368
    %414 = vmatprep.subr.bf16.mxu0 0
    %415 = vmatpush1.bf16.msra.mxu0 %v369
    %416 = vmatprep.subr.bf16.mxu0 0
    %417 = vmatpush1.bf16.msra.mxu0 %v370
    %418 = vmatprep.subr.bf16.mxu0 0
    %419 = vmatpush1.bf16.msra.mxu0 %v371
    %420 = vmatprep.mubr.bf16.mxu0 %v252
    %421 = vmatmul.mubr.bf16.gmra.mrb[0].mxu0 %v251
    %v422 = vpop.f32.mrb[0].mxu0
    %v423 = vadd.f32 %v290, %v422
    %v424 = vpop.f32.mrb[0].mxu0
    %v425 = vpop.f32.mrb[0].mxu0
    %v426 = vpop.f32.mrb[0].mxu0
    %427 = vdwg.mxu0
    %v428 = vmax.f32 %v423, 0.0
    %v429 = vld [vmem:[%s7] sm:$0x1]
    %v430 = vunpack.c.l.bf16 %v429
    %v431 = vlaneseq
    %v432 = vshrl.u32 %v431, 7
    %v433 = vsub.s32 0, %v432
    %v434 = vrot.slane %v430, %v433
    %v435 = vmul.f32 %v428, %v434
    %436 = vadd.xlane.f32.xlu0 %v435
    %v437 = vpop.xlane.xlu0 %436
    %v438 = vld [vmem:[#allocation2] sm:$0x1]
    %v440 = vlaneseq
    %v441 = vshrl.u32 %v440, 7
    %v442 = vsub.s32 0, %v441
    %v443 = vrot.slane %v438, %v442
    %v445 = vadd.f32 %v437, %v443
    %v446 = vxor.u32 %v445, 2147483648
    %v447 = vmul.f32 %v446, 1.442695
    %v448 = vpow.pop %v447
    %v449 = vadd.f32 %v448, 1.0
    %v450 = vrcp.pop %v449
    %v451 = vmul.f32 1.0, %v450
    %vm452 = vcmask 7168
    %453 = vst.msk [vmem:[%s9] sm:$0xff] %vm452, %v451
    // Predicated region
    $region54: #{tpu_custom_call.1} parent=1 // pred_check
      _
    $region55: #{tpu_custom_call.1} parent=1 // pred_check_branch
      %455 = sbr.rel (0) target = $region57
    $region56: #{tpu_custom_call.1} parent=1 // pred_region
      _
    $region57: #{tpu_custom_call.1} parent=1 // pred_fallthru
      _
    // Predicated region
    $region58: #{tpu_custom_call.1} parent=1 // pred_check
      _
    $region59: #{tpu_custom_call.1} parent=1 // pred_check_branch
      %457 = sbr.rel (0) target = $region61
    $region60: #{tpu_custom_call.1} parent=1 // pred_region
      _
    $region61: #{tpu_custom_call.1} parent=1 // pred_fallthru
      _
    %458 = vsyncpa [#allocation4], 1
    %459 = vsyncpa [#allocation6], 1
    %460 = vsyncpa [#allocation9], 1

</llo_original>
